<compile_context>
chip_gen: v7x
topology: tpu7x:2x2x1
jax: 0.10.0
libtpu: 0.0.40
codegen_flags: <defaults>
</compile_context>

<pallas_src>
import functools

import jax
import jax.numpy as jnp
from jax.experimental import pallas as pl
from jax.experimental.pallas import tpu as pltpu

_LANE = 128


def _round_up(x, m):
    return (x + m - 1) // m * m


def _cdiv(a, b):
    return -(-a // b)


# ---------------------------------------------------------------------------
# Pass 1: conv-as-matmul (MXU) + per-tile BN partial statistics
# ---------------------------------------------------------------------------
def _conv_stats_kernel(p_ref, w_ref, conv_ref, stats_ref, acc_ref, *,
                       tile_k, weight_resident):
    # NOTE: program ids only at top level (pl.when bodies must not bind program_id).
    k = pl.program_id(1)
    nk = pl.num_programs(1)

    @pl.when(k == 0)
    def _():
        acc_ref[...] = jnp.zeros_like(acc_ref)

    if weight_resident:
        # Full weight is VMEM-resident; slice the current K chunk on-chip.
        w_blk = w_ref[pl.ds(k * tile_k, tile_k), :]
    else:
        w_blk = w_ref[...]

    acc_ref[...] += jnp.dot(p_ref[...], w_blk,
                            preferred_element_type=jnp.float32)

    @pl.when(k == nk - 1)
    def _():
        acc = acc_ref[...]
        conv_ref[...] = acc.astype(conv_ref.dtype)
        # Padded patch rows are exact zeros -> their conv rows are exactly zero and
        # contribute nothing to sum / sum-of-squares, so no row masking is needed.
        s = jnp.sum(acc, axis=0, keepdims=True)             # [1, Cout_pad]
        ss = jnp.sum(acc * acc, axis=0, keepdims=True)      # [1, Cout_pad]
        pad = jnp.zeros((6, acc.shape[1]), jnp.float32)
        stats_ref[...] = jnp.concatenate([s, ss, pad], axis=0)   # (8, Cout_pad) block


# ---------------------------------------------------------------------------
# Pass 2: folded BN affine (FMA) + ReLU/ReLU6 + on-chip transpose to channel-major
# ---------------------------------------------------------------------------
def _bn_relu_kernel(conv_ref, scale_ref, shift_ref, o_ref, *, relu6):
    y = conv_ref[...].astype(jnp.float32) * scale_ref[...] + shift_ref[...]
    y = jnp.maximum(y, 0.0)
    if relu6:
        y = jnp.minimum(y, 6.0)
    # (tile_hw, Cout_pad) -> (1, Cout_pad, tile_hw): XLU transpose so the output comes
    # out channel-major and the wrapper needs no post-kernel relayout to reach NCHW.
    o_ref[...] = jnp.transpose(y, (1, 0))[None].astype(o_ref.dtype)


# ---------------------------------------------------------------------------
# im2col (wrapper-side, channels kept on the minor axis)
# ---------------------------------------------------------------------------
def _im2col_nhwc(x_nhwc, kernel_size, stride, padding, dilation):
    """x_nhwc: [N, H, W, C] -> patches [N, H_out*W_out, kh*kw*C] (K ordered (i, j, c))."""
    N, H, W, C = x_nhwc.shape
    kh, kw = kernel_size
    xp = jnp.pad(x_nhwc, ((0, 0), (padding, padding), (padding, padding), (0, 0)))
    H_out = (H + 2 * padding - dilation * (kh - 1) - 1) // stride + 1
    W_out = (W + 2 * padding - dilation * (kw - 1) - 1) // stride + 1

    cols = []
    for i in range(kh):
        for j in range(kw):
            hi, wi = i * dilation, j * dilation
            cols.append(xp[:, hi:hi + stride * H_out:stride,
                           wi:wi + stride * W_out:stride, :])     # [N, Ho, Wo, C]
    cols = jnp.stack(cols, axis=3)                                # [N, Ho, Wo, kh*kw, C]
    patches = cols.reshape(N, H_out * W_out, kh * kw * C)
    return patches, H_out, W_out


# ---------------------------------------------------------------------------
# Wrapper
# ---------------------------------------------------------------------------
def conv_bn_relu(x, weight, gamma, beta, *, stride=1, padding=0, dilation=1,
                 eps=1e-5, relu6=False, compute_dtype=jnp.bfloat16,
                 tile_m=512, tile_k=1024, pass2_rows=2048):
    """x: [N, Cin, H, W] (NCHW). weight: [Cout, Cin, kh, kw]. Returns NCHW."""
    N, Cin, H, W = x.shape
    Cout, Cin_w, kh, kw = weight.shape
    assert Cin == Cin_w, "groups > 1 not implemented"

    compute_dtype = jnp.dtype(compute_dtype)
    conv_dtype = compute_dtype            # bf16 intermediate when bf16 compute
    out_dtype = x.dtype
    in_isz = compute_dtype.itemsize
    conv_isz = jnp.dtype(conv_dtype).itemsize
    out_isz = jnp.dtype(out_dtype).itemsize

    # Cast first so the 9x-amplified patch tensor is written in the compute dtype.
    x_nhwc = jnp.transpose(x, (0, 2, 3, 1)).astype(compute_dtype)
    patches, H_out, W_out = _im2col_nhwc(x_nhwc, (kh, kw), stride, padding, dilation)
    HoWo = H_out * W_out
    K = Cin * kh * kw
    M = N * HoWo

    # --- tiling / padding ((8/16,128)-aligned, lane-dense Cout) -----------------
    m_align = 16 if in_isz < 4 else 8           # bf16 packs 16 rows per vreg
    cout_pad = _round_up(Cout, _LANE)           # keep at multiples of 128, no over-pad

    k128 = _round_up(K, _LANE)
    tile_k = min(tile_k, k128)
    num_k = _cdiv(k128, tile_k)
    tile_k = _round_up(_cdiv(k128, num_k), _LANE)
    k_pad = num_k * tile_k

    # Per-image row padding so pass 2 can emit a channel-major [N, C, H*W] output.
    tile_m = _round_up(max(m_align, min(tile_m, _round_up(HoWo, m_align))), m_align)
    hw_pad = _round_up(HoWo, tile_m)
    tiles_per_img = hw_pad // tile_m
    if N * tiles_per_img == 1 and HoWo > m_align:
        # Keep >= 2 M tiles so both v7x TensorCores get work on the parallel M axis.
        tile_m = _round_up(_cdiv(HoWo, 2), m_align)
        hw_pad = _round_up(HoWo, tile_m)
        tiles_per_img = hw_pad // tile_m
    num_m = N * tiles_per_img
    m_pad = N * hw_pad

    patches_p = jnp.pad(patches, ((0, 0), (0, hw_pad - HoWo), (0, k_pad - K)))
    patches_p = patches_p.reshape(m_pad, k_pad)
    # Permute only the tiny weight to match the (kh, kw, c) K ordering.
    w2d = jnp.transpose(weight, (2, 3, 1, 0)).reshape(K, Cout).astype(compute_dtype)
    w_p = jnp.pad(w2d, ((0, k_pad - K), (0, cout_pad - Cout)))

    # Full weight VMEM-resident (fetched once) unless it is too large.
    weight_resident = 2 * k_pad * cout_pad * in_isz <= (16 << 20)
    if weight_resident:
        w_spec = pl.BlockSpec((k_pad, cout_pad), lambda i, k: (0, 0))
    else:
        w_spec = pl.BlockSpec((tile_k, cout_pad), lambda i, k: (k, 0))

    vmem_est = (2 * tile_m * tile_k * in_isz
                + (2 * k_pad * cout_pad * in_isz if weight_resident
                   else 2 * tile_k * cout_pad * in_isz)
                + 2 * tile_m * cout_pad * conv_isz
                + 2 * 8 * cout_pad * 4
                + tile_m * cout_pad * 4)
    vmem_limit = int(min(96 << 20, max(32 << 20, int(1.5 * vmem_est) + (4 << 20))))

    # --- pass 1: tiled matmul + per-tile BN partials ----------------------------
    conv_flat, stats = pl.pallas_call(
        functools.partial(_conv_stats_kernel, tile_k=tile_k,
                          weight_resident=weight_resident),
        grid=(num_m, num_k),
        in_specs=[
            pl.BlockSpec((tile_m, tile_k), lambda i, k: (i, k)),
            w_spec,
        ],
        out_specs=[
            pl.BlockSpec((tile_m, cout_pad), lambda i, k: (i, 0)),
            pl.BlockSpec((8, cout_pad), lambda i, k: (i, 0)),
        ],
        out_shape=[
            jax.ShapeDtypeStruct((m_pad, cout_pad), conv_dtype),
            jax.ShapeDtypeStruct((num_m * 8, cout_pad), jnp.float32),
        ],
        scratch_shapes=[pltpu.VMEM((tile_m, cout_pad), jnp.float32)],
        compiler_params=pltpu.CompilerParams(
            dimension_semantics=("parallel", "arbitrary"),
            vmem_limit_bytes=vmem_limit),
    )(patches_p, w_p)

    # --- tiny cross-tile reduction + BN folding (wrapper-side) ------------------
    stats = stats.reshape(num_m, 8, cout_pad)
    ch_sum = jnp.sum(stats[:, 0, :], axis=0)
    ch_sumsq = jnp.sum(stats[:, 1, :], axis=0)
    mean = ch_sum / M
    # Biased variance (PyTorch BN training normalization); f32 stats, clamp >= 0.
    var = jnp.maximum(ch_sumsq / M - mean * mean, 0.0)

    gamma_p = jnp.pad(gamma.astype(jnp.float32), (0, cout_pad - Cout))
    beta_p = jnp.pad(beta.astype(jnp.float32), (0, cout_pad - Cout))
    scale1 = gamma_p * jax.lax.rsqrt(var + eps)
    shift1 = beta_p - mean * scale1
    scale2d = scale1.reshape(1, cout_pad)
    shift2d = shift1.reshape(1, cout_pad)

    # --- pass 2: streaming BN-affine + ReLU, channel-major output ---------------
    cap_rows = max(tile_m, min(pass2_rows,
                               (8 << 20) // max(1, cout_pad * (conv_isz + out_isz))))
    fct = 1
    for cand in range(tiles_per_img, 0, -1):
        if tiles_per_img % cand == 0 and cand * tile_m <= cap_rows:
            fct = cand
            break
    tile_hw = tile_m * fct
    tiles2 = hw_pad // tile_hw

    out_cm = pl.pallas_call(
        functools.partial(_bn_relu_kernel, relu6=relu6),
        grid=(N, tiles2),
        in_specs=[
            pl.BlockSpec((tile_hw, cout_pad), lambda n, j: (n * tiles2 + j, 0)),
            pl.BlockSpec((1, cout_pad), lambda n, j: (0, 0)),
            pl.BlockSpec((1, cout_pad), lambda n, j: (0, 0)),
        ],
        out_specs=pl.BlockSpec((1, cout_pad, tile_hw), lambda n, j: (n, 0, j)),
        out_shape=jax.ShapeDtypeStruct((N, cout_pad, hw_pad), out_dtype),
        compiler_params=pltpu.CompilerParams(
            dimension_semantics=("parallel", "parallel"),
            vmem_limit_bytes=vmem_limit),
    )(conv_flat, scale2d, shift2d)

    # Channel-major [N, C_pad, hw_pad] -> NCHW is a slice + reshape, no relayout.
    return out_cm[:, :Cout, :HoWo].reshape(N, Cout, H_out, W_out)


# ---------------------------------------------------------------------------
# Plain-JAX reference (PyTorch Conv2d(bias=False) + BatchNorm2d(train) + ReLU)
# ---------------------------------------------------------------------------
def _reference(x, weight, gamma, beta, *, stride, padding, dilation, eps, relu6):
    y = jax.lax.conv_general_dilated(
        x, weight,
        window_strides=(stride, stride),
        padding=[(padding, padding), (padding, padding)],
        rhs_dilation=(dilation, dilation),
        dimension_numbers=("NCHW", "OIHW", "NCHW"))
    mean = jnp.mean(y, axis=(0, 2, 3), keepdims=True)
    var = jnp.mean((y - mean) ** 2, axis=(0, 2, 3), keepdims=True)
    y = (y - mean) * jax.lax.rsqrt(var + eps)
    y = y * gamma.reshape(1, -1, 1, 1) + beta.reshape(1, -1, 1, 1)
    y = jnp.maximum(y, 0.0)
    if relu6:
        y = jnp.minimum(y, 6.0)
    return y


if __name__ == "__main__":
    # _ConvBNReLU(in_channels=4, out_channels=8, kernel_size=3, stride=1, padding=1)
    N, Cin, H, W = 2, 4, 16, 16
    Cout, kh, kw = 8, 3, 3
    stride, padding, dilation, relu6 = 1, 1, 1, False
    eps = 1e-5

    key = jax.random.PRNGKey(0)
    kx, kwt = jax.random.split(key)
    x = jax.random.normal(kx, (N, Cin, H, W), dtype=jnp.float32)
    weight = jax.random.normal(kwt, (Cout, Cin, kh, kw), dtype=jnp.float32) * 0.1
    gamma = jnp.ones((Cout,), dtype=jnp.float32)   # BatchNorm2d default init
    beta = jnp.zeros((Cout,), dtype=jnp.float32)

    # Default path: bf16 MXU compute with f32 accumulation (review item #2/#3).
    # Compare against the reference computed on bf16-rounded inputs (bf16xbf16 products
    # are exact in f32, so only summation order + bf16 intermediate rounding differ).
    out = conv_bn_relu(x, weight, gamma, beta, stride=stride, padding=padding,
                       dilation=dilation, eps=eps, relu6=relu6)
    out = jax.block_until_ready(out)
    assert out.shape == (N, Cout, H, W)
    x_r = x.astype(jnp.bfloat16).astype(jnp.float32)
    w_r = weight.astype(jnp.bfloat16).astype(jnp.float32)
    ref_bf16 = _reference(x_r, w_r, gamma, beta, stride=stride, padding=padding,
                          dilation=dilation, eps=eps, relu6=relu6)
    assert jnp.allclose(out, ref_bf16, atol=1e-2, rtol=1e-2), "bf16 path mismatch"

    # f32 compute path sanity check.  Loose tolerance: on real TPUs both the Pallas
    # matmul and the XLA reference convolution run f32 dots at the backend's default
    # reduced (bf16-operand) MXU precision, with different rounding patterns.
    out_f32 = conv_bn_relu(x, weight, gamma, beta, stride=stride, padding=padding,
                           dilation=dilation, eps=eps, relu6=relu6,
                           compute_dtype=jnp.float32)
    out_f32 = jax.block_until_ready(out_f32)
    ref = _reference(x, weight, gamma, beta, stride=stride, padding=padding,
                     dilation=dilation, eps=eps, relu6=relu6)
    assert jnp.allclose(out_f32, ref, atol=5e-2, rtol=5e-2), "f32 path mismatch"

    print("KERNEL_OK")
</pallas_src>

<mosaic_0001>
module attributes {stable_mosaic.version = 11 : i64} {
  func.func @_conv_stats_kernel(%arg0: i32, %arg1: i32, %arg2: memref<256x128xbf16, #tpu.memory_space<vmem>>, %arg3: memref<128x128xbf16, #tpu.memory_space<vmem>>, %arg4: memref<256x128xbf16, #tpu.memory_space<vmem>>, %arg5: memref<8x128xf32, #tpu.memory_space<vmem>>, %arg6: memref<256x128xf32, #tpu.memory_space<vmem>>) attributes {dimension_semantics = [#tpu.dimension_semantics<parallel>, #tpu.dimension_semantics<arbitrary>], iteration_bounds = array<i64: 2, 1>, scalar_prefetch = 0 : i64, scratch_operands = 1 : i64, tpu.core_type = #tpu.core_type<tc>, window_params = [{transform_indices = @transform_0, window_bounds = array<i64: 256, 128>}, {pipeline_mode = #tpu.pipeline_mode<synchronous>, transform_indices = @transform_1, window_bounds = array<i64: 128, 128>}, {transform_indices = @transform_2, window_bounds = array<i64: 256, 128>}, {transform_indices = @transform_3, window_bounds = array<i64: 8, 128>}]} {
    %c0_i32 = arith.constant 0 : i32
    %0 = arith.cmpi eq, %arg1, %c0_i32 : i32
    %1 = arith.extui %0 : i1 to i32
    %c0_i32_0 = arith.constant 0 : i32
    %2 = arith.cmpi ne, %1, %c0_i32_0 : i32
    scf.if %2 {
      %cst_9 = arith.constant 0.000000e+00 : f32
      %14 = vector.broadcast %cst_9 : f32 to vector<256x128xf32>
      %c0_10 = arith.constant 0 : index
      %c0_11 = arith.constant 0 : index
      %15 = vector.load %arg6[%c0_10, %c0_11] : memref<256x128xf32, #tpu.memory_space<vmem>>, vector<256x128xf32>
      tpu.vector_store %arg6[%c0_10, %c0_11], %14 {strides = array<i32>} : memref<256x128xf32, #tpu.memory_space<vmem>>, vector<256x128xf32>,
    } else {
    }
    %c128_i32 = arith.constant 128 : i32
    %3 = arith.muli %arg1, %c128_i32 : i32
    %4 = arith.index_cast %3 : i32 to index
    %c0 = arith.constant 0 : index
    %5 = vector.load %arg3[%4, %c0] : memref<128x128xbf16, #tpu.memory_space<vmem>>, vector<128x128xbf16>
    %c0_1 = arith.constant 0 : index
    %c0_2 = arith.constant 0 : index
    %6 = vector.load %arg6[%c0_1, %c0_2] : memref<256x128xf32, #tpu.memory_space<vmem>>, vector<256x128xf32>
    %c0_3 = arith.constant 0 : index
    %c0_4 = arith.constant 0 : index
    %7 = vector.load %arg2[%c0_3, %c0_4] : memref<256x128xbf16, #tpu.memory_space<vmem>>, vector<256x128xbf16>
    %cst = arith.constant dense<0.000000e+00> : vector<256x128xf32>
    %8 = tpu.matmul %7, %5, %cst {dimension_numbers = #tpu.dot_dimension_numbers<[1], [0], [0], [1], [0, 0, 1, 1], [], []>} : vector<256x128xbf16>, vector<128x128xbf16>, vector<256x128xf32> -> vector<256x128xf32>
    %9 = arith.addf %6, %8 : vector<256x128xf32>
    %c0_5 = arith.constant 0 : index
    %c0_6 = arith.constant 0 : index
    %10 = vector.load %arg6[%c0_5, %c0_6] : memref<256x128xf32, #tpu.memory_space<vmem>>, vector<256x128xf32>
    tpu.vector_store %arg6[%c0_5, %c0_6], %9 {strides = array<i32>} : memref<256x128xf32, #tpu.memory_space<vmem>>, vector<256x128xf32>,
    %c0_i32_7 = arith.constant 0 : i32
    %11 = arith.cmpi eq, %arg1, %c0_i32_7 : i32
    %12 = arith.extui %11 : i1 to i32
    %c0_i32_8 = arith.constant 0 : i32
    %13 = arith.cmpi ne, %12, %c0_i32_8 : i32
    scf.if %13 {
      %c0_9 = arith.constant 0 : index
      %c0_10 = arith.constant 0 : index
      %14 = vector.load %arg6[%c0_9, %c0_10] : memref<256x128xf32, #tpu.memory_space<vmem>>, vector<256x128xf32>
      %15 = arith.truncf %14 : vector<256x128xf32> to vector<256x128xbf16>
      %c0_11 = arith.constant 0 : index
      %c0_12 = arith.constant 0 : index
      %16 = vector.load %arg4[%c0_11, %c0_12] : memref<256x128xbf16, #tpu.memory_space<vmem>>, vector<256x128xbf16>
      tpu.vector_store %arg4[%c0_11, %c0_12], %15 {strides = array<i32>} : memref<256x128xbf16, #tpu.memory_space<vmem>>, vector<256x128xbf16>,
      %cst_13 = arith.constant dense<0.000000e+00> : vector<128xf32>
      %17 = vector.multi_reduction <add>, %14, %cst_13 [0] : vector<256x128xf32> to vector<128xf32>
      %18 = vector.shape_cast %17 : vector<128xf32> to vector<1x128xf32>
      %19 = arith.mulf %14, %14 : vector<256x128xf32>
      %cst_14 = arith.constant dense<0.000000e+00> : vector<128xf32>
      %20 = vector.multi_reduction <add>, %19, %cst_14 [0] : vector<256x128xf32> to vector<128xf32>
      %21 = vector.shape_cast %20 : vector<128xf32> to vector<1x128xf32>
      %cst_15 = arith.constant 0.000000e+00 : f32
      %22 = vector.broadcast %cst_15 : f32 to vector<6x128xf32>
      %23 = tpu.concatenate %18, %21, %22 in 0 : vector<1x128xf32>, vector<1x128xf32>, vector<6x128xf32> -> vector<8x128xf32>
      %c0_16 = arith.constant 0 : index
      %c0_17 = arith.constant 0 : index
      %24 = vector.load %arg5[%c0_16, %c0_17] : memref<8x128xf32, #tpu.memory_space<vmem>>, vector<8x128xf32>
      tpu.vector_store %arg5[%c0_16, %c0_17], %23 {strides = array<i32>} : memref<8x128xf32, #tpu.memory_space<vmem>>, vector<8x128xf32>,
    } else {
    }
    return
  }
  func.func @transform_0(%arg0: i32, %arg1: i32) -> (i32, i32) {
    %c0_i32 = arith.constant 0 : i32
    return %arg0, %arg1 : i32, i32
  }
  func.func @transform_1(%arg0: i32, %arg1: i32) -> (i32, i32) {
    %c0_i32 = arith.constant 0 : i32
    %c0_i32_0 = arith.constant 0 : i32
    %c0_i32_1 = arith.constant 0 : i32
    return %c0_i32, %c0_i32_0 : i32, i32
  }
  func.func @transform_2(%arg0: i32, %arg1: i32) -> (i32, i32) {
    %c0_i32 = arith.constant 0 : i32
    %c0_i32_0 = arith.constant 0 : i32
    return %arg0, %c0_i32 : i32, i32
  }
  func.func @transform_3(%arg0: i32, %arg1: i32) -> (i32, i32) {
    %c0_i32 = arith.constant 0 : i32
    %c0_i32_0 = arith.constant 0 : i32
    return %arg0, %c0_i32 : i32, i32
  }
}

</mosaic_0001>

<llo_original>
// kernel: tpu_custom_call.1
$region0: #{tpu_custom_call.1}
  #allocation0 [shape = 'u32[]', space=smem, size = 0x4, offset = 0x4, fixed_abs, tag = 'smem constant byte address 0x4 - core index']
  #allocation1 [shape = 'u32[144,128]{1,0:T(1,128)}', space=vmem, size = 0x12000, scoped, tag = 'internal scratch']
  #allocation2 [shape = 'f32[256,128]{1,0:T(8,128)}', space=vmem, size = 0x20000, scoped, tag = 'scratch operand']
  %s0 = inlined_call_operand.hbm [shape: bf16[512,128], index: 0, kind: input, shape index: {}]
  %s1 = inlined_call_operand.hbm [shape: bf16[128,128], index: 1, kind: input, shape index: {}]
  %s2 = inlined_call_operand.hbm [shape: bf16[512,128], index: 2, kind: output, shape index: {0}]
  %s3 = inlined_call_operand.hbm [shape: f32[16,128], index: 3, kind: output, shape index: {1}]
  %4 = xla_tuple %s2, %s3
  %s5 = sld [smem:[#allocation0]]
  $region65: #{tpu_custom_call.1} parent=0
    _
  %s7 = ssub.s32 1, %s5
  %s8 = scalar_select 0, %s7, %s5
  $region1: #{tpu_custom_call.1} parent=0
    #allocation3 [shape = 'u8[131072]{0}', space=vmem, size = 0x20000, scoped, tag = 'input window, operand 0']
    #allocation4 [shape = 's32[2]{0}', space=sflag, size = 0x8, scoped, tag = 'scoped memory for tpu_custom_call.1']
    #allocation5 [shape = 's32[2]{0}', space=sflag, size = 0x8, scoped, tag = 'scoped memory for tpu_custom_call.1']
    #allocation6 [shape = 'u8[32768]{0}', space=vmem, size = 0x8000, scoped, tag = 'input window, operand 1, single buffered']
    #allocation7 [shape = 's32[1]{0}', space=sflag, size = 0x4, scoped, tag = 'scoped memory for tpu_custom_call.1']
    #allocation8 [shape = 'u8[131072]{0}', space=vmem, size = 0x20000, scoped, tag = 'output window, operand 0']
    #allocation9 [shape = 'u8[8192]{0}', space=vmem, size = 0x2000, scoped, tag = 'output window, operand 1']
    #allocation10 [shape = 's32[2]{0}', space=sflag, size = 0x8, scoped, tag = 'scoped memory for tpu_custom_call.1']
    %9 = vsyncpa [#allocation4], 0
    %s10 = scalar_lea.sflag [#allocation4], 1
    %11 = vsyncpa %s10, 0
    %12 = vsyncpa [#allocation7], 0
    %13 = vsyncpa [#allocation5], 0
    %s14 = scalar_lea.sflag [#allocation5], 1
    %15 = vsyncpa %s14, 0
    %16 = vsyncpa [#allocation10], 0
    %s17 = scalar_lea.sflag [#allocation10], 1
    %18 = vsyncpa %s17, 0
    loop: start=0, step=1, limit=4
    $region2: #{tpu_custom_call.1} parent=1 // loop_pre_header
      _
    $region3: #{tpu_custom_call.1} parent=1 // loop_header
      %s20 = sphi 0, %s24
      %p21 = scmp.ge.s32.totalorder %s20, 4
      %s27 = sphi 0, %s39
      %s28 = sphi 0, %s35
      %s29 = sphi 0, %s27
      %s30 = sphi 0, %s28
      %s31 = sphi 0, %s29
      %s32 = sphi 0, %s30
      %s44 = sphi 0, %s46
      %s47 = sphi 0, %s44
      %s48 = sphi 0, %s47
      %s64 = sphi 0, %s48
      %s68 = sphi 0, %s68
      %s70 = sphi 0, %s68
      %s71 = sphi 0, %s70
      %s85 = sphi 0, %s71
      %s91 = sphi 0, %s93
      %s94 = sphi 0, %s91
      %s95 = sphi 0, %s94
      %s111 = sphi 0, %s95
      %s117 = sphi 0, %s119
      %s120 = sphi 0, %s117
      %s121 = sphi 0, %s120
      %s137 = sphi 0, %s121
    $region4: #{tpu_custom_call.1} parent=1 // loop_header_branch
      %23 = sbr.rel (%p21) target = $region8
    $region5: #{tpu_custom_call.1} parent=1 // loop_body
      %s25 = ssub.s32 %s20, 1
      %s26 = ssub.s32 %s20, 2
      %s33 = sadd.s32 1, %s28
      %p34 = scmp.ge.s32.totalorder %s33, 1
      %s35 = scalar_select %p34, 0, %s33
      %s36 = sadd.s32 1, %s27
      %s37 = scalar_select %p34, %s36, %s27
      %p38 = scmp.ge.s32.totalorder %s37, 2
      %s39 = scalar_select %p38, 0, %s37
      %s40 = ssub.s32 %s27, %s39
      %s41 = ssub.s32 %s28, %s35
      %s42 = sor.u32 %s40, %s41
      %p43 = scmp.eq.s32.totalorder %s42, 0
      %s45 = sadd.s32 %s44, 1
      %s46 = scalar_select %p43, %s44, %s45
      %p49 = pneg %p43
      %p50 = scmp.eq.s32.totalorder %s20, 1
      %p51 = por %p49, %p50
      %p52 = scmp.ne.s32.totalorder %s44, %s47
      %p53 = scmp.eq.s32.totalorder %s20, 0
      %p54 = por %p52, %p53
      %p55 = scmp.ne.s32.totalorder %s44, %s47
      %p56 = scmp.eq.s32.totalorder %s25, 1
      %p57 = por %p55, %p56
      %p58 = scmp.ne.s32.totalorder %s47, %s48
      %p59 = scmp.eq.s32.totalorder %s25, 0
      %p60 = por %p58, %p59
      %p61 = scmp.ne.s32.totalorder %s47, %s48
      %p62 = scmp.eq.s32.totalorder %s26, 1
      %p63 = por %p61, %p62
      %p65 = scmp.ne.s32.totalorder %s48, %s64
      %p66 = scmp.eq.s32.totalorder %s26, 0
      %p67 = por %p65, %p66
      %s69 = sadd.s32 %s68, 1
      %p72 = scmp.eq.s32.totalorder %s20, 1
      %p73 = scmp.ne.s32.totalorder %s68, %s70
      %p74 = scmp.eq.s32.totalorder %s20, 0
      %p75 = por %p73, %p74
      %p76 = scmp.ne.s32.totalorder %s68, %s70
      %p77 = scmp.eq.s32.totalorder %s25, 1
      %p78 = por %p76, %p77
      %p79 = scmp.ne.s32.totalorder %s70, %s71
      %p80 = scmp.eq.s32.totalorder %s25, 0
      %p81 = por %p79, %p80
      %p82 = scmp.ne.s32.totalorder %s70, %s71
      %p83 = scmp.eq.s32.totalorder %s26, 1
      %p84 = por %p82, %p83
      %p86 = scmp.ne.s32.totalorder %s71, %s85
      %p87 = scmp.eq.s32.totalorder %s26, 0
      %p88 = por %p86, %p87
      %s89 = ssub.s32 %s27, %s39
      %p90 = scmp.eq.s32.totalorder %s89, 0
      %s92 = sadd.s32 %s91, 1
      %s93 = scalar_select %p90, %s91, %s92
      %p96 = pneg %p90
      %p97 = scmp.eq.s32.totalorder %s20, 1
      %p98 = por %p96, %p97
      %p99 = scmp.ne.s32.totalorder %s91, %s94
      %p100 = scmp.eq.s32.totalorder %s20, 0
      %p101 = por %p99, %p100
      %p102 = scmp.ne.s32.totalorder %s91, %s94
      %p103 = scmp.eq.s32.totalorder %s25, 1
      %p104 = por %p102, %p103
      %p105 = scmp.ne.s32.totalorder %s94, %s95
      %p106 = scmp.eq.s32.totalorder %s25, 0
      %p107 = por %p105, %p106
      %p108 = scmp.ne.s32.totalorder %s94, %s95
      %p109 = scmp.eq.s32.totalorder %s26, 1
      %p110 = por %p108, %p109
      %p112 = scmp.ne.s32.totalorder %s95, %s111
      %p113 = scmp.eq.s32.totalorder %s26, 0
      %p114 = por %p112, %p113
      %s115 = ssub.s32 %s27, %s39
      %p116 = scmp.eq.s32.totalorder %s115, 0
      %s118 = sadd.s32 %s117, 1
      %s119 = scalar_select %p116, %s117, %s118
      %p122 = pneg %p116
      %p123 = scmp.eq.s32.totalorder %s20, 1
      %p124 = por %p122, %p123
      %p125 = scmp.ne.s32.totalorder %s117, %s120
      %p126 = scmp.eq.s32.totalorder %s20, 0
      %p127 = por %p125, %p126
      %p128 = scmp.ne.s32.totalorder %s117, %s120
      %p129 = scmp.eq.s32.totalorder %s25, 1
      %p130 = por %p128, %p129
      %p131 = scmp.ne.s32.totalorder %s120, %s121
      %p132 = scmp.eq.s32.totalorder %s25, 0
      %p133 = por %p131, %p132
      %p134 = scmp.ne.s32.totalorder %s120, %s121
      %p135 = scmp.eq.s32.totalorder %s26, 1
      %p136 = por %p134, %p135
      %p138 = scmp.ne.s32.totalorder %s121, %s137
      %p139 = scmp.eq.s32.totalorder %s26, 0
      %p140 = por %p138, %p139
      %p141 = scmp.le.s32.totalorder 1, %s20
      %p142 = scmp.lt.s32.totalorder %s20, 3
      %p143 = pnand %p141, %p142
      %p144 = pneg %p143
      // Predicated region
      $region9: #{tpu_custom_call.1} parent=5 // pred_check
        _
      $region10: #{tpu_custom_call.1} parent=5 // pred_check_branch
        %146 = sbr.rel (%p143) target = $region12
      $region11: #{tpu_custom_call.1} parent=5 // pred_region
        %s147 = ssub.s32 %s20, 1
        // Predicated region
        $region13: #{tpu_custom_call.1} parent=11 // pred_check
          %p148 = pneg %p81
        $region14: #{tpu_custom_call.1} parent=11 // pred_check_branch
          %150 = sbr.rel (%p148) target = $region16
        $region15: #{tpu_custom_call.1} parent=11 // pred_region
          %s152 = ssub.s32 1024, 1024
          %153 = vsyncadd [#allocation7], %s152
          %s154 = sshll.u32 [#allocation6], 4
          %s155 = int_to_ptr.vmem [resolvable:$true] %s154
          %160 = dma.hbm_to_vmem [thread:$0]  %s1, 1024, %s155, [#allocation7], 64, 64, 4
        $region16: #{tpu_custom_call.1} parent=11 // pred_fallthru
          _
      $region12: #{tpu_custom_call.1} parent=5 // pred_fallthru
        _
      %p161 = scmp.lt.s32.totalorder %s20, 2
      // Predicated region
      $region17: #{tpu_custom_call.1} parent=5 // pred_check
        %p162 = pneg %p161
      $region18: #{tpu_custom_call.1} parent=5 // pred_check_branch
        %164 = sbr.rel (%p162) target = $region20
      $region19: #{tpu_custom_call.1} parent=5 // pred_region
        // Predicated region
        $region21: #{tpu_custom_call.1} parent=19 // pred_check
          %p165 = pneg %p54
        $region22: #{tpu_custom_call.1} parent=19 // pred_check_branch
          %167 = sbr.rel (%p165) target = $region24
        $region23: #{tpu_custom_call.1} parent=19 // pred_region
          %s168 = sand.u32 %s44, 1
          %s169 = scalar_lea.sflag [#allocation4], %s168
          %s170 = sand.u32 %s44, 1
          %s171 = smul.addr %s170, 128
          %s172 = scalar_lea.vmem [#allocation3], %s171
          %s173 = smul.u32 32, %s27
          %s175 = ssub.s32 2048, 2048
          %176 = vsyncadd %s169, %s175
          %s177 = sadd.s32 %s28, %s173
          %s178 = smul.addr %s177, 64
          %s179 = scalar_lea.hbm %s0, %s178
          %s180 = sshll.u32 %s172, 4
          %s181 = int_to_ptr.vmem [resolvable:$true] %s180
          %186 = dma.hbm_to_vmem [thread:$0]  %s179, 2048, %s181, %s169, 64, 64, 4
        $region24: #{tpu_custom_call.1} parent=19 // pred_fallthru
          _
      $region20: #{tpu_custom_call.1} parent=5 // pred_fallthru
        _
      %p187 = scmp.le.s32.totalorder 1, %s20
      %p188 = scmp.lt.s32.totalorder %s20, 3
      %p189 = pnand %p187, %p188
      %p190 = pneg %p189
      // Predicated region
      $region25: #{tpu_custom_call.1} parent=5 // pred_check
        _
      $region26: #{tpu_custom_call.1} parent=5 // pred_check_branch
        %192 = sbr.rel (%p189) target = $region28
      $region27: #{tpu_custom_call.1} parent=5 // pred_region
        %s193 = ssub.s32 %s20, 1
        %s194 = sand.u32 %s47, 1
        %s195 = scalar_lea.sflag [#allocation4], %s194
        %s196 = sand.u32 %s47, 1
        %s197 = smul.addr %s196, 128
        %s198 = scalar_lea.vmem [#allocation3], %s197
        // Predicated region
        $region29: #{tpu_custom_call.1} parent=27 // pred_check
          %p199 = pneg %p60
        $region30: #{tpu_custom_call.1} parent=27 // pred_check_branch
          %201 = sbr.rel (%p199) target = $region32
        $region31: #{tpu_custom_call.1} parent=27 // pred_region
          %202 = dma.done %s195, 2048
        $region32: #{tpu_custom_call.1} parent=27 // pred_fallthru
          _
        // Predicated region
        $region33: #{tpu_custom_call.1} parent=27 // pred_check
          %p203 = pneg %p81
        $region34: #{tpu_custom_call.1} parent=27 // pred_check_branch
          %205 = sbr.rel (%p203) target = $region36
        $region35: #{tpu_custom_call.1} parent=27 // pred_region
          %206 = dma.done [#allocation7], 1024
        $region36: #{tpu_custom_call.1} parent=27 // pred_fallthru
          _
        %s207 = sand.u32 %s47, 1
        %s208 = scalar_lea.sflag [#allocation4], %s207
        %s209 = sand.u32 %s47, 1
        %s210 = smul.addr %s209, 128
        %s211 = scalar_lea.vmem [#allocation3], %s210
        %p212 = pneg %p60
        %p213 = pneg %p57
        %p214 = pneg %p81
        %p215 = pneg %p78
        %p216 = pneg %p107
        %p217 = pneg %p104
        %s218 = sand.u32 %s94, 1
        %s219 = scalar_lea.sflag [#allocation5], %s218
        %s220 = sand.u32 %s94, 1
        %s221 = smul.addr %s220, 128
        %s222 = scalar_lea.vmem [#allocation8], %s221
        %p223 = pneg %p133
        %p224 = pneg %p130
        %s225 = sand.u32 %s120, 1
        %s226 = scalar_lea.sflag [#allocation10], %s225
        %s227 = sand.u32 %s120, 1
        %s228 = smul.addr %s227, 8
        %s229 = scalar_lea.vmem [#allocation9], %s228
        %s230 = smul.u32 32, %s29
        %s231 = smul.u32 32, %s29
        %p233 = scmp.eq.s32.totalorder %s30, 0
        // Predicated region
        $region37: #{tpu_custom_call.1} parent=27 // pred_check
          %p234 = pneg %p233
        $region38: #{tpu_custom_call.1} parent=27 // pred_check_branch
          %236 = sbr.rel (%p234) target = $region40
        $region39: #{tpu_custom_call.1} parent=27 // pred_region
          %237 = vst [vmem:[#allocation2] sm:$0xff] 0.0
          %238 = vst [vmem:[#allocation2 + $0x8] sm:$0xff] 0.0
          %239 = vst [vmem:[#allocation2 + $0x10] sm:$0xff] 0.0
          %240 = vst [vmem:[#allocation2 + $0x18] sm:$0xff] 0.0
          %241 = vst [vmem:[#allocation2 + $0x20] sm:$0xff] 0.0
          %242 = vst [vmem:[#allocation2 + $0x28] sm:$0xff] 0.0
          %243 = vst [vmem:[#allocation2 + $0x30] sm:$0xff] 0.0
          %244 = vst [vmem:[#allocation2 + $0x38] sm:$0xff] 0.0
          %245 = vst [vmem:[#allocation2 + $0x40] sm:$0xff] 0.0
          %246 = vst [vmem:[#allocation2 + $0x48] sm:$0xff] 0.0
          %247 = vst [vmem:[#allocation2 + $0x50] sm:$0xff] 0.0
          %248 = vst [vmem:[#allocation2 + $0x58] sm:$0xff] 0.0
          %249 = vst [vmem:[#allocation2 + $0x60] sm:$0xff] 0.0
          %250 = vst [vmem:[#allocation2 + $0x68] sm:$0xff] 0.0
          %251 = vst [vmem:[#allocation2 + $0x70] sm:$0xff] 0.0
          %252 = vst [vmem:[#allocation2 + $0x78] sm:$0xff] 0.0
          %253 = vst [vmem:[#allocation2 + $0x80] sm:$0xff] 0.0
          %254 = vst [vmem:[#allocation2 + $0x88] sm:$0xff] 0.0
          %255 = vst [vmem:[#allocation2 + $0x90] sm:$0xff] 0.0
          %256 = vst [vmem:[#allocation2 + $0x98] sm:$0xff] 0.0
          %257 = vst [vmem:[#allocation2 + $0xa0] sm:$0xff] 0.0
          %258 = vst [vmem:[#allocation2 + $0xa8] sm:$0xff] 0.0
          %259 = vst [vmem:[#allocation2 + $0xb0] sm:$0xff] 0.0
          %260 = vst [vmem:[#allocation2 + $0xb8] sm:$0xff] 0.0
          %261 = vst [vmem:[#allocation2 + $0xc0] sm:$0xff] 0.0
          %262 = vst [vmem:[#allocation2 + $0xc8] sm:$0xff] 0.0
          %263 = vst [vmem:[#allocation2 + $0xd0] sm:$0xff] 0.0
          %264 = vst [vmem:[#allocation2 + $0xd8] sm:$0xff] 0.0
          %265 = vst [vmem:[#allocation2 + $0xe0] sm:$0xff] 0.0
          %266 = vst [vmem:[#allocation2 + $0xe8] sm:$0xff] 0.0
          %267 = vst [vmem:[#allocation2 + $0xf0] sm:$0xff] 0.0
          %268 = vst [vmem:[#allocation2 + $0xf8] sm:$0xff] 0.0
        $region40: #{tpu_custom_call.1} parent=27 // pred_fallthru
          _
        %s269 = smul.u32 %s30, 128
        %s270 = sshra.s32 %s269, 3
        %s271 = sand.u32 %s269, 7
        %s272 = smul.addr %s270, 4
        %s273 = scalar_lea.vmem [#allocation6], %s272
        %v274 = vld [vmem:[%s273] sm:$0xf]
        %v275 = vld [vmem:[%s273 + $0x4] sm:$0xf]
        %v276 = vld [vmem:[%s273 + $0x8] sm:$0xf]
        %v277 = vld [vmem:[%s273 + $0xc] sm:$0xf]
        %v278 = vld [vmem:[%s273 + $0x10] sm:$0xf]
        %v279 = vld [vmem:[%s273 + $0x14] sm:$0xf]
        %v280 = vld [vmem:[%s273 + $0x18] sm:$0xf]
        %v281 = vld [vmem:[%s273 + $0x1c] sm:$0xf]
        %v282 = vld [vmem:[%s273 + $0x20] sm:$0xf]
        %v283 = vld [vmem:[%s273 + $0x24] sm:$0xf]
        %v284 = vld [vmem:[%s273 + $0x28] sm:$0xf]
        %v285 = vld [vmem:[%s273 + $0x2c] sm:$0xf]
        %v286 = vld [vmem:[%s273 + $0x30] sm:$0xf]
        %v287 = vld [vmem:[%s273 + $0x34] sm:$0xf]
        %v288 = vld [vmem:[%s273 + $0x38] sm:$0xf]
        %v289 = vld [vmem:[%s273 + $0x3c] sm:$0xf]
        %v290 = vld [vmem:[#allocation2] sm:$0xff]
        %v291 = vld [vmem:[#allocation2 + $0x8] sm:$0xff]
        %v292 = vld [vmem:[#allocation2 + $0x10] sm:$0xff]
        %v293 = vld [vmem:[#allocation2 + $0x18] sm:$0xff]
        %v294 = vld [vmem:[#allocation2 + $0x20] sm:$0xff]
        %v295 = vld [vmem:[#allocation2 + $0x28] sm:$0xff]
        %v296 = vld [vmem:[#allocation2 + $0x30] sm:$0xff]
        %v297 = vld [vmem:[#allocation2 + $0x38] sm:$0xff]
        %v298 = vld [vmem:[#allocation2 + $0x40] sm:$0xff]
        %v299 = vld [vmem:[#allocation2 + $0x48] sm:$0xff]
        %v300 = vld [vmem:[#allocation2 + $0x50] sm:$0xff]
        %v301 = vld [vmem:[#allocation2 + $0x58] sm:$0xff]
        %v302 = vld [vmem:[#allocation2 + $0x60] sm:$0xff]
        %v303 = vld [vmem:[#allocation2 + $0x68] sm:$0xff]
        %v304 = vld [vmem:[#allocation2 + $0x70] sm:$0xff]
        %v305 = vld [vmem:[#allocation2 + $0x78] sm:$0xff]
        %v306 = vld [vmem:[#allocation2 + $0x80] sm:$0xff]
        %v307 = vld [vmem:[#allocation2 + $0x88] sm:$0xff]
        %v308 = vld [vmem:[#allocation2 + $0x90] sm:$0xff]
        %v309 = vld [vmem:[#allocation2 + $0x98] sm:$0xff]
        %v310 = vld [vmem:[#allocation2 + $0xa0] sm:$0xff]
        %v311 = vld [vmem:[#allocation2 + $0xa8] sm:$0xff]
        %v312 = vld [vmem:[#allocation2 + $0xb0] sm:$0xff]
        %v313 = vld [vmem:[#allocation2 + $0xb8] sm:$0xff]
        %v314 = vld [vmem:[#allocation2 + $0xc0] sm:$0xff]
        %v315 = vld [vmem:[#allocation2 + $0xc8] sm:$0xff]
        %v316 = vld [vmem:[#allocation2 + $0xd0] sm:$0xff]
        %v317 = vld [vmem:[#allocation2 + $0xd8] sm:$0xff]
        %v318 = vld [vmem:[#allocation2 + $0xe0] sm:$0xff]
        %v319 = vld [vmem:[#allocation2 + $0xe8] sm:$0xff]
        %v320 = vld [vmem:[#allocation2 + $0xf0] sm:$0xff]
        %v321 = vld [vmem:[#allocation2 + $0xf8] sm:$0xff]
        %v322 = vld [vmem:[%s198] sm:$0xf]
        %v323 = vld [vmem:[%s198 + $0x4] sm:$0xf]
        %v324 = vld [vmem:[%s198 + $0x8] sm:$0xf]
        %v325 = vld [vmem:[%s198 + $0xc] sm:$0xf]
        %v326 = vld [vmem:[%s198 + $0x10] sm:$0xf]
        %v327 = vld [vmem:[%s198 + $0x14] sm:$0xf]
        %v328 = vld [vmem:[%s198 + $0x18] sm:$0xf]
        %v329 = vld [vmem:[%s198 + $0x1c] sm:$0xf]
        %v330 = vld [vmem:[%s198 + $0x20] sm:$0xf]
        %v331 = vld [vmem:[%s198 + $0x24] sm:$0xf]
        %v332 = vld [vmem:[%s198 + $0x28] sm:$0xf]
        %v333 = vld [vmem:[%s198 + $0x2c] sm:$0xf]
        %v334 = vld [vmem:[%s198 + $0x30] sm:$0xf]
        %v335 = vld [vmem:[%s198 + $0x34] sm:$0xf]
        %v336 = vld [vmem:[%s198 + $0x38] sm:$0xf]
        %v337 = vld [vmem:[%s198 + $0x3c] sm:$0xf]
        %v338 = vld [vmem:[%s198 + $0x40] sm:$0xf]
        %v339 = vld [vmem:[%s198 + $0x44] sm:$0xf]
        %v340 = vld [vmem:[%s198 + $0x48] sm:$0xf]
        %v341 = vld [vmem:[%s198 + $0x4c] sm:$0xf]
        %v342 = vld [vmem:[%s198 + $0x50] sm:$0xf]
        %v343 = vld [vmem:[%s198 + $0x54] sm:$0xf]
        %v344 = vld [vmem:[%s198 + $0x58] sm:$0xf]
        %v345 = vld [vmem:[%s198 + $0x5c] sm:$0xf]
        %v346 = vld [vmem:[%s198 + $0x60] sm:$0xf]
        %v347 = vld [vmem:[%s198 + $0x64] sm:$0xf]
        %v348 = vld [vmem:[%s198 + $0x68] sm:$0xf]
        %v349 = vld [vmem:[%s198 + $0x6c] sm:$0xf]
        %v350 = vld [vmem:[%s198 + $0x70] sm:$0xf]
        %v351 = vld [vmem:[%s198 + $0x74] sm:$0xf]
        %v352 = vld [vmem:[%s198 + $0x78] sm:$0xf]
        %v353 = vld [vmem:[%s198 + $0x7c] sm:$0xf]
        %v386 = vunpack.c.l.b16 %v322
        %v387 = vunpack.c.l.b16 %v323
        %v388 = vunpack.c.l.b16 %v324
        %v389 = vunpack.c.l.b16 %v325
        %v390 = vunpack.c.l.b16 %v326
        %v391 = vunpack.c.l.b16 %v327
        %v392 = vunpack.c.l.b16 %v328
        %v393 = vunpack.c.l.b16 %v329
        %v394 = vunpack.c.l.b16 %v330
        %v395 = vunpack.c.l.b16 %v331
        %v396 = vunpack.c.l.b16 %v332
        %v397 = vunpack.c.l.b16 %v333
        %v398 = vunpack.c.l.b16 %v334
        %v399 = vunpack.c.l.b16 %v335
        %v400 = vunpack.c.l.b16 %v336
        %v401 = vunpack.c.l.b16 %v337
        %v402 = vunpack.c.l.b16 %v338
        %v403 = vunpack.c.l.b16 %v339
        %v404 = vunpack.c.l.b16 %v340
        %v405 = vunpack.c.l.b16 %v341
        %v406 = vunpack.c.l.b16 %v342
        %v407 = vunpack.c.l.b16 %v343
        %v408 = vunpack.c.l.b16 %v344
        %v409 = vunpack.c.l.b16 %v345
        %v410 = vunpack.c.l.b16 %v346
        %v411 = vunpack.c.l.b16 %v347
        %v412 = vunpack.c.l.b16 %v348
        %v413 = vunpack.c.l.b16 %v349
        %v414 = vunpack.c.l.b16 %v350
        %v415 = vunpack.c.l.b16 %v351
        %v416 = vunpack.c.l.b16 %v352
        %v417 = vunpack.c.l.b16 %v353
        %v418 = vpack.c.b16 %v387, %v386
        %v419 = vpack.c.b16 %v389, %v388
        %v420 = vpack.c.b16 %v391, %v390
        %v421 = vpack.c.b16 %v393, %v392
        %v422 = vpack.c.b16 %v395, %v394
        %v423 = vpack.c.b16 %v397, %v396
        %v424 = vpack.c.b16 %v399, %v398
        %v425 = vpack.c.b16 %v401, %v400
        %v426 = vpack.c.b16 %v403, %v402
        %v427 = vpack.c.b16 %v405, %v404
        %v428 = vpack.c.b16 %v407, %v406
        %v429 = vpack.c.b16 %v409, %v408
        %v430 = vpack.c.b16 %v411, %v410
        %v431 = vpack.c.b16 %v413, %v412
        %v432 = vpack.c.b16 %v415, %v414
        %v433 = vpack.c.b16 %v417, %v416
        %v466 = vunpack.c.l.b16 %v274
        %v467 = vunpack.c.l.b16 %v275
        %v468 = vunpack.c.l.b16 %v276
        %v469 = vunpack.c.l.b16 %v277
        %v470 = vunpack.c.l.b16 %v278
        %v471 = vunpack.c.l.b16 %v279
        %v472 = vunpack.c.l.b16 %v280
        %v473 = vunpack.c.l.b16 %v281
        %v474 = vunpack.c.l.b16 %v282
        %v475 = vunpack.c.l.b16 %v283
        %v476 = vunpack.c.l.b16 %v284
        %v477 = vunpack.c.l.b16 %v285
        %v478 = vunpack.c.l.b16 %v286
        %v479 = vunpack.c.l.b16 %v287
        %v480 = vunpack.c.l.b16 %v288
        %v481 = vunpack.c.l.b16 %v289
        %v482 = vpack.c.b16 %v467, %v466
        %v483 = vpack.c.b16 %v469, %v468
        %v484 = vpack.c.b16 %v471, %v470
        %v485 = vpack.c.b16 %v473, %v472
        %v486 = vpack.c.b16 %v475, %v474
        %v487 = vpack.c.b16 %v477, %v476
        %v488 = vpack.c.b16 %v479, %v478
        %v489 = vpack.c.b16 %v481, %v480
        %498 = vmatprep.subr.bf16.mxu0 0
        %499 = vmatpush1.bf16.msra.mxu0 %v482
        %500 = vmatprep.subr.bf16.mxu0 0
        %501 = vmatpush1.bf16.msra.mxu0 %v483
        %502 = vmatprep.subr.bf16.mxu0 0
        %503 = vmatpush1.bf16.msra.mxu0 %v484
        %504 = vmatprep.subr.bf16.mxu0 0
        %505 = vmatpush1.bf16.msra.mxu0 %v485
        %506 = vmatprep.subr.bf16.mxu0 0
        %507 = vmatpush1.bf16.msra.mxu0 %v486
        %508 = vmatprep.subr.bf16.mxu0 0
        %509 = vmatpush1.bf16.msra.mxu0 %v487
        %510 = vmatprep.subr.bf16.mxu0 0
        %511 = vmatpush1.bf16.msra.mxu0 %v488
        %512 = vmatprep.subr.bf16.mxu0 0
        %513 = vmatpush1.bf16.msra.mxu0 %v489
        %514 = vmatprep.subr.bf16.mxu0 0
        %515 = vmatpush1.bf16.msra.mxu0 0
        %516 = vmatprep.subr.bf16.mxu0 0
        %517 = vmatpush1.bf16.msra.mxu0 0
        %518 = vmatprep.subr.bf16.mxu0 0
        %519 = vmatpush1.bf16.msra.mxu0 0
        %520 = vmatprep.subr.bf16.mxu0 0
        %521 = vmatpush1.bf16.msra.mxu0 0
        %522 = vmatprep.subr.bf16.mxu0 0
        %523 = vmatpush1.bf16.msra.mxu0 0
        %524 = vmatprep.subr.bf16.mxu0 0
        %525 = vmatpush1.bf16.msra.mxu0 0
        %526 = vmatprep.subr.bf16.mxu0 0
        %527 = vmatpush1.bf16.msra.mxu0 0
        %528 = vmatprep.subr.bf16.mxu0 0
        %529 = vmatpush1.bf16.msra.mxu0 0
        %530 = vmatprep.mubr.bf16.mxu0 0
        %531 = vmatmul.mubr.bf16.gmra.mrb[0].mxu0 %v418
        %v532 = vpop.f32.mrb[0].mxu0
        %v533 = vadd.f32 0.0, %v532
        %v534 = vpop.f32.mrb[0].mxu0
        %v535 = vpop.f32.mrb[0].mxu0
        %v536 = vadd.f32 0.0, %v535
        %v537 = vpop.f32.mrb[0].mxu0
        %538 = vmatprep.mubr.bf16.mxu0 0
        %539 = vmatmul.mubr.bf16.gmra.mrb[0].mxu0 %v419
        %v540 = vpop.f32.mrb[0].mxu0
        %v541 = vadd.f32 0.0, %v540
        %v542 = vpop.f32.mrb[0].mxu0
        %v543 = vpop.f32.mrb[0].mxu0
        %v544 = vadd.f32 0.0, %v543
        %v545 = vpop.f32.mrb[0].mxu0
        %546 = vmatprep.mubr.bf16.mxu0 0
        %547 = vmatmul.mubr.bf16.gmra.mrb[0].mxu0 %v420
        %v548 = vpop.f32.mrb[0].mxu0
        %v549 = vadd.f32 0.0, %v548
        %v550 = vpop.f32.mrb[0].mxu0
        %v551 = vpop.f32.mrb[0].mxu0
        %v552 = vadd.f32 0.0, %v551
        %v553 = vpop.f32.mrb[0].mxu0
        %554 = vmatprep.mubr.bf16.mxu0 0
        %555 = vmatmul.mubr.bf16.gmra.mrb[0].mxu0 %v421
        %v556 = vpop.f32.mrb[0].mxu0
        %v557 = vadd.f32 0.0, %v556
        %v558 = vpop.f32.mrb[0].mxu0
        %v559 = vpop.f32.mrb[0].mxu0
        %v560 = vadd.f32 0.0, %v559
        %v561 = vpop.f32.mrb[0].mxu0
        %562 = vmatprep.mubr.bf16.mxu0 0
        %563 = vmatmul.mubr.bf16.gmra.mrb[0].mxu0 %v422
        %v564 = vpop.f32.mrb[0].mxu0
        %v565 = vadd.f32 0.0, %v564
        %v566 = vpop.f32.mrb[0].mxu0
        %v567 = vpop.f32.mrb[0].mxu0
        %v568 = vadd.f32 0.0, %v567
        %v569 = vpop.f32.mrb[0].mxu0
        %570 = vmatprep.mubr.bf16.mxu0 0
        %571 = vmatmul.mubr.bf16.gmra.mrb[0].mxu0 %v423
        %v572 = vpop.f32.mrb[0].mxu0
        %v573 = vadd.f32 0.0, %v572
        %v574 = vpop.f32.mrb[0].mxu0
        %v575 = vpop.f32.mrb[0].mxu0
        %v576 = vadd.f32 0.0, %v575
        %v577 = vpop.f32.mrb[0].mxu0
        %578 = vmatprep.mubr.bf16.mxu0 0
        %579 = vmatmul.mubr.bf16.gmra.mrb[0].mxu0 %v424
        %v580 = vpop.f32.mrb[0].mxu0
        %v581 = vadd.f32 0.0, %v580
        %v582 = vpop.f32.mrb[0].mxu0
        %v583 = vpop.f32.mrb[0].mxu0
        %v584 = vadd.f32 0.0, %v583
        %v585 = vpop.f32.mrb[0].mxu0
        %586 = vmatprep.mubr.bf16.mxu0 0
        %587 = vmatmul.mubr.bf16.gmra.mrb[0].mxu0 %v425
        %v588 = vpop.f32.mrb[0].mxu0
        %v589 = vadd.f32 0.0, %v588
        %v590 = vpop.f32.mrb[0].mxu0
        %v591 = vpop.f32.mrb[0].mxu0
        %v592 = vadd.f32 0.0, %v591
        %v593 = vpop.f32.mrb[0].mxu0
        %594 = vmatprep.mubr.bf16.mxu0 0
        %595 = vmatmul.mubr.bf16.gmra.mrb[0].mxu0 %v426
        %v596 = vpop.f32.mrb[0].mxu0
        %v597 = vadd.f32 0.0, %v596
        %v598 = vpop.f32.mrb[0].mxu0
        %v599 = vpop.f32.mrb[0].mxu0
        %v600 = vadd.f32 0.0, %v599
        %v601 = vpop.f32.mrb[0].mxu0
        %602 = vmatprep.mubr.bf16.mxu0 0
        %603 = vmatmul.mubr.bf16.gmra.mrb[0].mxu0 %v427
        %v604 = vpop.f32.mrb[0].mxu0
        %v605 = vadd.f32 0.0, %v604
        %v606 = vpop.f32.mrb[0].mxu0
        %v607 = vpop.f32.mrb[0].mxu0
        %v608 = vadd.f32 0.0, %v607
        %v609 = vpop.f32.mrb[0].mxu0
        %610 = vmatprep.mubr.bf16.mxu0 0
        %611 = vmatmul.mubr.bf16.gmra.mrb[0].mxu0 %v428
        %v612 = vpop.f32.mrb[0].mxu0
        %v613 = vadd.f32 0.0, %v612
        %v614 = vpop.f32.mrb[0].mxu0
        %v615 = vpop.f32.mrb[0].mxu0
        %v616 = vadd.f32 0.0, %v615
        %v617 = vpop.f32.mrb[0].mxu0
        %618 = vmatprep.mubr.bf16.mxu0 0
        %619 = vmatmul.mubr.bf16.gmra.mrb[0].mxu0 %v429
        %v620 = vpop.f32.mrb[0].mxu0
        %v621 = vadd.f32 0.0, %v620
        %v622 = vpop.f32.mrb[0].mxu0
        %v623 = vpop.f32.mrb[0].mxu0
        %v624 = vadd.f32 0.0, %v623
        %v625 = vpop.f32.mrb[0].mxu0
        %626 = vmatprep.mubr.bf16.mxu0 0
        %627 = vmatmul.mubr.bf16.gmra.mrb[0].mxu0 %v430
        %v628 = vpop.f32.mrb[0].mxu0
        %v629 = vadd.f32 0.0, %v628
        %v630 = vpop.f32.mrb[0].mxu0
        %v631 = vpop.f32.mrb[0].mxu0
        %v632 = vadd.f32 0.0, %v631
        %v633 = vpop.f32.mrb[0].mxu0
        %634 = vmatprep.mubr.bf16.mxu0 0
        %635 = vmatmul.mubr.bf16.gmra.mrb[0].mxu0 %v431
        %v636 = vpop.f32.mrb[0].mxu0
        %v637 = vadd.f32 0.0, %v636
        %v638 = vpop.f32.mrb[0].mxu0
        %v639 = vpop.f32.mrb[0].mxu0
        %v640 = vadd.f32 0.0, %v639
        %v641 = vpop.f32.mrb[0].mxu0
        %642 = vmatprep.mubr.bf16.mxu0 0
        %643 = vmatmul.mubr.bf16.gmra.mrb[0].mxu0 %v432
        %v644 = vpop.f32.mrb[0].mxu0
        %v645 = vadd.f32 0.0, %v644
        %v646 = vpop.f32.mrb[0].mxu0
        %v647 = vpop.f32.mrb[0].mxu0
        %v648 = vadd.f32 0.0, %v647
        %v649 = vpop.f32.mrb[0].mxu0
        %650 = vmatprep.mubr.bf16.mxu0 0
        %651 = vmatmul.mubr.bf16.gmra.mrb[0].mxu0 %v433
        %v652 = vpop.f32.mrb[0].mxu0
        %v653 = vadd.f32 0.0, %v652
        %v654 = vpop.f32.mrb[0].mxu0
        %v655 = vpop.f32.mrb[0].mxu0
        %v656 = vadd.f32 0.0, %v655
        %v657 = vpop.f32.mrb[0].mxu0
        %658 = vdwg.mxu0
        %v659 = vadd.f32 %v290, %v533
        %v660 = vadd.f32 %v291, %v536
        %v661 = vadd.f32 %v292, %v541
        %v662 = vadd.f32 %v293, %v544
        %v663 = vadd.f32 %v294, %v549
        %v664 = vadd.f32 %v295, %v552
        %v665 = vadd.f32 %v296, %v557
        %v666 = vadd.f32 %v297, %v560
        %v667 = vadd.f32 %v298, %v565
        %v668 = vadd.f32 %v299, %v568
        %v669 = vadd.f32 %v300, %v573
        %v670 = vadd.f32 %v301, %v576
        %v671 = vadd.f32 %v302, %v581
        %v672 = vadd.f32 %v303, %v584
        %v673 = vadd.f32 %v304, %v589
        %v674 = vadd.f32 %v305, %v592
        %v675 = vadd.f32 %v306, %v597
        %v676 = vadd.f32 %v307, %v600
        %v677 = vadd.f32 %v308, %v605
        %v678 = vadd.f32 %v309, %v608
        %v679 = vadd.f32 %v310, %v613
        %v680 = vadd.f32 %v311, %v616
        %v681 = vadd.f32 %v312, %v621
        %v682 = vadd.f32 %v313, %v624
        %v683 = vadd.f32 %v314, %v629
        %v684 = vadd.f32 %v315, %v632
        %v685 = vadd.f32 %v316, %v637
        %v686 = vadd.f32 %v317, %v640
        %v687 = vadd.f32 %v318, %v645
        %v688 = vadd.f32 %v319, %v648
        %v689 = vadd.f32 %v320, %v653
        %v690 = vadd.f32 %v321, %v656
        %691 = vst [vmem:[#allocation2] sm:$0xff] %v659
        %692 = vst [vmem:[#allocation2 + $0x8] sm:$0xff] %v660
        %693 = vst [vmem:[#allocation2 + $0x10] sm:$0xff] %v661
        %694 = vst [vmem:[#allocation2 + $0x18] sm:$0xff] %v662
        %695 = vst [vmem:[#allocation2 + $0x20] sm:$0xff] %v663
        %696 = vst [vmem:[#allocation2 + $0x28] sm:$0xff] %v664
        %697 = vst [vmem:[#allocation2 + $0x30] sm:$0xff] %v665
        %698 = vst [vmem:[#allocation2 + $0x38] sm:$0xff] %v666
        %699 = vst [vmem:[#allocation2 + $0x40] sm:$0xff] %v667
        %700 = vst [vmem:[#allocation2 + $0x48] sm:$0xff] %v668
        %701 = vst [vmem:[#allocation2 + $0x50] sm:$0xff] %v669
        %702 = vst [vmem:[#allocation2 + $0x58] sm:$0xff] %v670
        %703 = vst [vmem:[#allocation2 + $0x60] sm:$0xff] %v671
        %704 = vst [vmem:[#allocation2 + $0x68] sm:$0xff] %v672
        %705 = vst [vmem:[#allocation2 + $0x70] sm:$0xff] %v673
        %706 = vst [vmem:[#allocation2 + $0x78] sm:$0xff] %v674
        %707 = vst [vmem:[#allocation2 + $0x80] sm:$0xff] %v675
        %708 = vst [vmem:[#allocation2 + $0x88] sm:$0xff] %v676
        %709 = vst [vmem:[#allocation2 + $0x90] sm:$0xff] %v677
        %710 = vst [vmem:[#allocation2 + $0x98] sm:$0xff] %v678
        %711 = vst [vmem:[#allocation2 + $0xa0] sm:$0xff] %v679
        %712 = vst [vmem:[#allocation2 + $0xa8] sm:$0xff] %v680
        %713 = vst [vmem:[#allocation2 + $0xb0] sm:$0xff] %v681
        %714 = vst [vmem:[#allocation2 + $0xb8] sm:$0xff] %v682
        %715 = vst [vmem:[#allocation2 + $0xc0] sm:$0xff] %v683
        %716 = vst [vmem:[#allocation2 + $0xc8] sm:$0xff] %v684
        %717 = vst [vmem:[#allocation2 + $0xd0] sm:$0xff] %v685
        %718 = vst [vmem:[#allocation2 + $0xd8] sm:$0xff] %v686
        %719 = vst [vmem:[#allocation2 + $0xe0] sm:$0xff] %v687
        %720 = vst [vmem:[#allocation2 + $0xe8] sm:$0xff] %v688
        %721 = vst [vmem:[#allocation2 + $0xf0] sm:$0xff] %v689
        %722 = vst [vmem:[#allocation2 + $0xf8] sm:$0xff] %v690
        // Predicated region
        $region41: #{tpu_custom_call.1} parent=27 // pred_check
          %p723 = pneg %p233
        $region42: #{tpu_custom_call.1} parent=27 // pred_check_branch
          %725 = sbr.rel (%p723) target = $region44
        $region43: #{tpu_custom_call.1} parent=27 // pred_region
          %v726 = vld [vmem:[#allocation2] sm:$0xff]
          %v727 = vld [vmem:[#allocation2 + $0x8] sm:$0xff]
          %v728 = vld [vmem:[#allocation2 + $0x10] sm:$0xff]
          %v729 = vld [vmem:[#allocation2 + $0x18] sm:$0xff]
          %v730 = vld [vmem:[#allocation2 + $0x20] sm:$0xff]
          %v731 = vld [vmem:[#allocation2 + $0x28] sm:$0xff]
          %v732 = vld [vmem:[#allocation2 + $0x30] sm:$0xff]
          %v733 = vld [vmem:[#allocation2 + $0x38] sm:$0xff]
          %v734 = vld [vmem:[#allocation2 + $0x40] sm:$0xff]
          %v735 = vld [vmem:[#allocation2 + $0x48] sm:$0xff]
          %v736 = vld [vmem:[#allocation2 + $0x50] sm:$0xff]
          %v737 = vld [vmem:[#allocation2 + $0x58] sm:$0xff]
          %v738 = vld [vmem:[#allocation2 + $0x60] sm:$0xff]
          %v739 = vld [vmem:[#allocation2 + $0x68] sm:$0xff]
          %v740 = vld [vmem:[#allocation2 + $0x70] sm:$0xff]
          %v741 = vld [vmem:[#allocation2 + $0x78] sm:$0xff]
          %v742 = vld [vmem:[#allocation2 + $0x80] sm:$0xff]
          %v743 = vld [vmem:[#allocation2 + $0x88] sm:$0xff]
          %v744 = vld [vmem:[#allocation2 + $0x90] sm:$0xff]
          %v745 = vld [vmem:[#allocation2 + $0x98] sm:$0xff]
          %v746 = vld [vmem:[#allocation2 + $0xa0] sm:$0xff]
          %v747 = vld [vmem:[#allocation2 + $0xa8] sm:$0xff]
          %v748 = vld [vmem:[#allocation2 + $0xb0] sm:$0xff]
          %v749 = vld [vmem:[#allocation2 + $0xb8] sm:$0xff]
          %v750 = vld [vmem:[#allocation2 + $0xc0] sm:$0xff]
          %v751 = vld [vmem:[#allocation2 + $0xc8] sm:$0xff]
          %v752 = vld [vmem:[#allocation2 + $0xd0] sm:$0xff]
          %v753 = vld [vmem:[#allocation2 + $0xd8] sm:$0xff]
          %v754 = vld [vmem:[#allocation2 + $0xe0] sm:$0xff]
          %v755 = vld [vmem:[#allocation2 + $0xe8] sm:$0xff]
          %v756 = vld [vmem:[#allocation2 + $0xf0] sm:$0xff]
          %v757 = vld [vmem:[#allocation2 + $0xf8] sm:$0xff]
          %v758 = vpack.c.bf16 %v727, %v726
          %v759 = vpack.c.bf16 %v729, %v728
          %v760 = vpack.c.bf16 %v731, %v730
          %v761 = vpack.c.bf16 %v733, %v732
          %v762 = vpack.c.bf16 %v735, %v734
          %v763 = vpack.c.bf16 %v737, %v736
          %v764 = vpack.c.bf16 %v739, %v738
          %v765 = vpack.c.bf16 %v741, %v740
          %v766 = vpack.c.bf16 %v743, %v742
          %v767 = vpack.c.bf16 %v745, %v744
          %v768 = vpack.c.bf16 %v747, %v746
          %v769 = vpack.c.bf16 %v749, %v748
          %v770 = vpack.c.bf16 %v751, %v750
          %v771 = vpack.c.bf16 %v753, %v752
          %v772 = vpack.c.bf16 %v755, %v754
          %v773 = vpack.c.bf16 %v757, %v756
          %v790 = vunpack.c.l.b16 %v758
          %v791 = vunpack.c.h.b16 %v758
          %v792 = vunpack.c.l.b16 %v759
          %v793 = vunpack.c.h.b16 %v759
          %v794 = vunpack.c.l.b16 %v760
          %v795 = vunpack.c.h.b16 %v760
          %v796 = vunpack.c.l.b16 %v761
          %v797 = vunpack.c.h.b16 %v761
          %v798 = vunpack.c.l.b16 %v762
          %v799 = vunpack.c.h.b16 %v762
          %v800 = vunpack.c.l.b16 %v763
          %v801 = vunpack.c.h.b16 %v763
          %v802 = vunpack.c.l.b16 %v764
          %v803 = vunpack.c.h.b16 %v764
          %v804 = vunpack.c.l.b16 %v765
          %v805 = vunpack.c.h.b16 %v765
          %v806 = vunpack.c.l.b16 %v766
          %v807 = vunpack.c.h.b16 %v766
          %v808 = vunpack.c.l.b16 %v767
          %v809 = vunpack.c.h.b16 %v767
          %v810 = vunpack.c.l.b16 %v768
          %v811 = vunpack.c.h.b16 %v768
          %v812 = vunpack.c.l.b16 %v769
          %v813 = vunpack.c.h.b16 %v769
          %v814 = vunpack.c.l.b16 %v770
          %v815 = vunpack.c.h.b16 %v770
          %v816 = vunpack.c.l.b16 %v771
          %v817 = vunpack.c.h.b16 %v771
          %v818 = vunpack.c.l.b16 %v772
          %v819 = vunpack.c.h.b16 %v772
          %v820 = vunpack.c.l.b16 %v773
          %v821 = vunpack.c.h.b16 %v773
          %v822 = vpack.c.b16 %v790, %v790
          %v823 = vpack.c.b16 %v791, %v791
          %v824 = vpack.c.b16 %v792, %v792
          %v825 = vpack.c.b16 %v793, %v793
          %v826 = vpack.c.b16 %v794, %v794
          %v827 = vpack.c.b16 %v795, %v795
          %v828 = vpack.c.b16 %v796, %v796
          %v829 = vpack.c.b16 %v797, %v797
          %v830 = vpack.c.b16 %v798, %v798
          %v831 = vpack.c.b16 %v799, %v799
          %v832 = vpack.c.b16 %v800, %v800
          %v833 = vpack.c.b16 %v801, %v801
          %v834 = vpack.c.b16 %v802, %v802
          %v835 = vpack.c.b16 %v803, %v803
          %v836 = vpack.c.b16 %v804, %v804
          %v837 = vpack.c.b16 %v805, %v805
          %v838 = vpack.c.b16 %v806, %v806
          %v839 = vpack.c.b16 %v807, %v807
          %v840 = vpack.c.b16 %v808, %v808
          %v841 = vpack.c.b16 %v809, %v809
          %v842 = vpack.c.b16 %v810, %v810
          %v843 = vpack.c.b16 %v811, %v811
          %v844 = vpack.c.b16 %v812, %v812
          %v845 = vpack.c.b16 %v813, %v813
          %v846 = vpack.c.b16 %v814, %v814
          %v847 = vpack.c.b16 %v815, %v815
          %v848 = vpack.c.b16 %v816, %v816
          %v849 = vpack.c.b16 %v817, %v817
          %v850 = vpack.c.b16 %v818, %v818
          %v851 = vpack.c.b16 %v819, %v819
          %v852 = vpack.c.b16 %v820, %v820
          %v853 = vpack.c.b16 %v821, %v821
          %886 = vst [vmem:[%s222] sm:$0xf] %v822
          %887 = vst [vmem:[%s222 + $0x4] sm:$0xf] %v823
          %888 = vst [vmem:[%s222 + $0x8] sm:$0xf] %v824
          %889 = vst [vmem:[%s222 + $0xc] sm:$0xf] %v825
          %890 = vst [vmem:[%s222 + $0x10] sm:$0xf] %v826
          %891 = vst [vmem:[%s222 + $0x14] sm:$0xf] %v827
          %892 = vst [vmem:[%s222 + $0x18] sm:$0xf] %v828
          %893 = vst [vmem:[%s222 + $0x1c] sm:$0xf] %v829
          %894 = vst [vmem:[%s222 + $0x20] sm:$0xf] %v830
          %895 = vst [vmem:[%s222 + $0x24] sm:$0xf] %v831
          %896 = vst [vmem:[%s222 + $0x28] sm:$0xf] %v832
          %897 = vst [vmem:[%s222 + $0x2c] sm:$0xf] %v833
          %898 = vst [vmem:[%s222 + $0x30] sm:$0xf] %v834
          %899 = vst [vmem:[%s222 + $0x34] sm:$0xf] %v835
          %900 = vst [vmem:[%s222 + $0x38] sm:$0xf] %v836
          %901 = vst [vmem:[%s222 + $0x3c] sm:$0xf] %v837
          %902 = vst [vmem:[%s222 + $0x40] sm:$0xf] %v838
          %903 = vst [vmem:[%s222 + $0x44] sm:$0xf] %v839
          %904 = vst [vmem:[%s222 + $0x48] sm:$0xf] %v840
          %905 = vst [vmem:[%s222 + $0x4c] sm:$0xf] %v841
          %906 = vst [vmem:[%s222 + $0x50] sm:$0xf] %v842
          %907 = vst [vmem:[%s222 + $0x54] sm:$0xf] %v843
          %908 = vst [vmem:[%s222 + $0x58] sm:$0xf] %v844
          %909 = vst [vmem:[%s222 + $0x5c] sm:$0xf] %v845
          %910 = vst [vmem:[%s222 + $0x60] sm:$0xf] %v846
          %911 = vst [vmem:[%s222 + $0x64] sm:$0xf] %v847
          %912 = vst [vmem:[%s222 + $0x68] sm:$0xf] %v848
          %913 = vst [vmem:[%s222 + $0x6c] sm:$0xf] %v849
          %914 = vst [vmem:[%s222 + $0x70] sm:$0xf] %v850
          %915 = vst [vmem:[%s222 + $0x74] sm:$0xf] %v851
          %916 = vst [vmem:[%s222 + $0x78] sm:$0xf] %v852
          %917 = vst [vmem:[%s222 + $0x7c] sm:$0xf] %v853
          %v918 = vadd.f32 %v726, %v727
          %v919 = vadd.f32 %v918, %v728
          %v920 = vadd.f32 %v919, %v729
          %v921 = vadd.f32 %v920, %v730
          %v922 = vadd.f32 %v921, %v731
          %v923 = vadd.f32 %v922, %v732
          %v924 = vadd.f32 %v923, %v733
          %v925 = vadd.f32 %v924, %v734
          %v926 = vadd.f32 %v925, %v735
          %v927 = vadd.f32 %v926, %v736
          %v928 = vadd.f32 %v927, %v737
          %v929 = vadd.f32 %v928, %v738
          %v930 = vadd.f32 %v929, %v739
          %v931 = vadd.f32 %v930, %v740
          %v932 = vadd.f32 %v931, %v741
          %v933 = vadd.f32 %v932, %v742
          %v934 = vadd.f32 %v933, %v743
          %v935 = vadd.f32 %v934, %v744
          %v936 = vadd.f32 %v935, %v745
          %v937 = vadd.f32 %v936, %v746
          %v938 = vadd.f32 %v937, %v747
          %v939 = vadd.f32 %v938, %v748
          %v940 = vadd.f32 %v939, %v749
          %v941 = vadd.f32 %v940, %v750
          %v942 = vadd.f32 %v941, %v751
          %v943 = vadd.f32 %v942, %v752
          %v944 = vadd.f32 %v943, %v753
          %v945 = vadd.f32 %v944, %v754
          %v946 = vadd.f32 %v945, %v755
          %v947 = vadd.f32 %v946, %v756
          %v948 = vadd.f32 %v947, %v757
          %v949 = vrot.slane %v948, 4
          %v950 = vadd.f32 %v948, %v949
          %v951 = vrot.slane %v950, 2
          %v952 = vadd.f32 %v950, %v951
          %v953 = vrot.slane %v952, 1
          %v954 = vadd.f32 %v952, %v953
          %v955 = vmul.f32 %v726, %v726
          %v956 = vmul.f32 %v727, %v727
          %v957 = vmul.f32 %v728, %v728
          %v958 = vmul.f32 %v729, %v729
          %v959 = vmul.f32 %v730, %v730
          %v960 = vmul.f32 %v731, %v731
          %v961 = vmul.f32 %v732, %v732
          %v962 = vmul.f32 %v733, %v733
          %v963 = vmul.f32 %v734, %v734
          %v964 = vmul.f32 %v735, %v735
          %v965 = vmul.f32 %v736, %v736
          %v966 = vmul.f32 %v737, %v737
          %v967 = vmul.f32 %v738, %v738
          %v968 = vmul.f32 %v739, %v739
          %v969 = vmul.f32 %v740, %v740
          %v970 = vmul.f32 %v741, %v741
          %v971 = vmul.f32 %v742, %v742
          %v972 = vmul.f32 %v743, %v743
          %v973 = vmul.f32 %v744, %v744
          %v974 = vmul.f32 %v745, %v745
          %v975 = vmul.f32 %v746, %v746
          %v976 = vmul.f32 %v747, %v747
          %v977 = vmul.f32 %v748, %v748
          %v978 = vmul.f32 %v749, %v749
          %v979 = vmul.f32 %v750, %v750
          %v980 = vmul.f32 %v751, %v751
          %v981 = vmul.f32 %v752, %v752
          %v982 = vmul.f32 %v753, %v753
          %v983 = vmul.f32 %v754, %v754
          %v984 = vmul.f32 %v755, %v755
          %v985 = vmul.f32 %v756, %v756
          %v986 = vmul.f32 %v757, %v757
          %v987 = vadd.f32 %v955, %v956
          %v988 = vadd.f32 %v987, %v957
          %v989 = vadd.f32 %v988, %v958
          %v990 = vadd.f32 %v989, %v959
          %v991 = vadd.f32 %v990, %v960
          %v992 = vadd.f32 %v991, %v961
          %v993 = vadd.f32 %v992, %v962
          %v994 = vadd.f32 %v993, %v963
          %v995 = vadd.f32 %v994, %v964
          %v996 = vadd.f32 %v995, %v965
          %v997 = vadd.f32 %v996, %v966
          %v998 = vadd.f32 %v997, %v967
          %v999 = vadd.f32 %v998, %v968
          %v1000 = vadd.f32 %v999, %v969
          %v1001 = vadd.f32 %v1000, %v970
          %v1002 = vadd.f32 %v1001, %v971
          %v1003 = vadd.f32 %v1002, %v972
          %v1004 = vadd.f32 %v1003, %v973
          %v1005 = vadd.f32 %v1004, %v974
          %v1006 = vadd.f32 %v1005, %v975
          %v1007 = vadd.f32 %v1006, %v976
          %v1008 = vadd.f32 %v1007, %v977
          %v1009 = vadd.f32 %v1008, %v978
          %v1010 = vadd.f32 %v1009, %v979
          %v1011 = vadd.f32 %v1010, %v980
          %v1012 = vadd.f32 %v1011, %v981
          %v1013 = vadd.f32 %v1012, %v982
          %v1014 = vadd.f32 %v1013, %v983
          %v1015 = vadd.f32 %v1014, %v984
          %v1016 = vadd.f32 %v1015, %v985
          %v1017 = vadd.f32 %v1016, %v986
          %v1018 = vrot.slane %v1017, 4
          %v1019 = vadd.f32 %v1017, %v1018
          %v1020 = vrot.slane %v1019, 2
          %v1021 = vadd.f32 %v1019, %v1020
          %v1022 = vrot.slane %v1021, 1
          %v1023 = vadd.f32 %v1021, %v1022
          %vm1024 = vcmask 1040384
          %v1025 = vsel %vm1024, %v954, %v1023
          %vm1026 = vcmask 1041408
          %v1027 = vsel %vm1026, %v1025, 0.0
          %1028 = vst [vmem:[%s229] sm:$0xff] %v1027
        $region44: #{tpu_custom_call.1} parent=27 // pred_fallthru
          _
        %s1029 = sand.u32 %s94, 1
        %s1030 = scalar_lea.sflag [#allocation5], %s1029
        %s1031 = sand.u32 %s94, 1
        %s1032 = smul.addr %s1031, 128
        %s1033 = scalar_lea.vmem [#allocation8], %s1032
        %s1034 = sand.u32 %s120, 1
        %s1035 = scalar_lea.sflag [#allocation10], %s1034
        %s1036 = sand.u32 %s120, 1
        %s1037 = smul.addr %s1036, 8
        %s1038 = scalar_lea.vmem [#allocation9], %s1037
        // Predicated region
        $region45: #{tpu_custom_call.1} parent=27 // pred_check
          %p1039 = pneg %p104
        $region46: #{tpu_custom_call.1} parent=27 // pred_check_branch
          %1041 = sbr.rel (%p1039) target = $region48
        $region47: #{tpu_custom_call.1} parent=27 // pred_region
          %s1042 = smul.u32 32, %s29
          %s1044 = ssub.s32 2048, 2048
          %1045 = vsyncadd %s1030, %s1044
          %s1046 = smul.addr %s1042, 64
          %s1047 = scalar_lea.hbm %s2, %s1046
          %s1048 = sshll.u32 %s1033, 4
          %s1049 = int_to_ptr.vmem [resolvable:$true] %s1048
          %1054 = dma.vmem_to_hbm [thread:$0]  %s1049, 2048, %s1047, %s1030, 64, 64, 4
        $region48: #{tpu_custom_call.1} parent=27 // pred_fallthru
          _
        // Predicated region
        $region49: #{tpu_custom_call.1} parent=27 // pred_check
          %p1055 = pneg %p130
        $region50: #{tpu_custom_call.1} parent=27 // pred_check_branch
          %1057 = sbr.rel (%p1055) target = $region52
        $region51: #{tpu_custom_call.1} parent=27 // pred_region
          %s1059 = ssub.s32 128, 128
          %1060 = vsyncadd %s1035, %s1059
          %s1061 = smul.addr %s29, 128
          %s1062 = scalar_lea.hbm %s3, %s1061
          %s1064 = sshll.u32 %s1038, 4
          %s1065 = int_to_ptr.vmem [resolvable:$true] %s1064
          %1067 = dma.vmem_to_hbm [thread:$0]  %s1065, 128, %s1062, %s1035
        $region52: #{tpu_custom_call.1} parent=27 // pred_fallthru
          _
      $region28: #{tpu_custom_call.1} parent=5 // pred_fallthru
        _
      %p1068 = scmp.le.s32.totalorder 2, %s20
      // Predicated region
      $region53: #{tpu_custom_call.1} parent=5 // pred_check
        %p1069 = pneg %p1068
      $region54: #{tpu_custom_call.1} parent=5 // pred_check_branch
        %1071 = sbr.rel (%p1069) target = $region56
      $region55: #{tpu_custom_call.1} parent=5 // pred_region
        %s1072 = ssub.s32 %s20, 2
        // Predicated region
        $region57: #{tpu_custom_call.1} parent=55 // pred_check
          %p1073 = pneg %p110
        $region58: #{tpu_custom_call.1} parent=55 // pred_check_branch
          %1075 = sbr.rel (%p1073) target = $region60
        $region59: #{tpu_custom_call.1} parent=55 // pred_region
          %s1076 = sand.u32 %s95, 1
          %s1077 = scalar_lea.sflag [#allocation5], %s1076
          %s1078 = sand.u32 %s95, 1
          %s1079 = smul.addr %s1078, 128
          %s1080 = scalar_lea.vmem [#allocation8], %s1079
          %1081 = dma.done %s1077, 2048
        $region60: #{tpu_custom_call.1} parent=55 // pred_fallthru
          _
        // Predicated region
        $region61: #{tpu_custom_call.1} parent=55 // pred_check
          %p1082 = pneg %p136
        $region62: #{tpu_custom_call.1} parent=55 // pred_check_branch
          %1084 = sbr.rel (%p1082) target = $region64
        $region63: #{tpu_custom_call.1} parent=55 // pred_region
          %s1085 = sand.u32 %s121, 1
          %s1086 = scalar_lea.sflag [#allocation10], %s1085
          %s1087 = sand.u32 %s121, 1
          %s1088 = smul.addr %s1087, 8
          %s1089 = scalar_lea.vmem [#allocation9], %s1088
          %1090 = dma.done %s1086, 128
        $region64: #{tpu_custom_call.1} parent=55 // pred_fallthru
          _
      $region56: #{tpu_custom_call.1} parent=5 // pred_fallthru
        _
    $region6: #{tpu_custom_call.1} parent=1 // loop_footer
      %s24 = sadd.s32 1, %s20
    $region7: #{tpu_custom_call.1} parent=1 // loop_footer_branch
      %19 = sbr.rel target = $region3
    $region8: #{tpu_custom_call.1} parent=1 // loop_exit
      _
    %1091 = vsyncpa [#allocation4], 1
    %s1092 = scalar_lea.sflag [#allocation4], 1
    %1093 = vsyncpa %s1092, 1
    %1094 = vsyncpa [#allocation7], 1
    %1095 = vsyncpa [#allocation5], 1
    %s1096 = scalar_lea.sflag [#allocation5], 1
    %1097 = vsyncpa %s1096, 1
    %1098 = vsyncpa [#allocation10], 1
    %s1099 = scalar_lea.sflag [#allocation10], 1
    %1100 = vsyncpa %s1099, 1

</llo_original>
